<compile_context>
chip_gen: v6e
topology: v6e:2x2x1
jax: 0.10.0
libtpu: 0.0.40
codegen_flags: <defaults>
</compile_context>

<pallas_src>
import jax
import jax.numpy as jnp
from jax.experimental import pallas as pl
from jax.experimental.pallas import tpu as pltpu


def _cdiv(a, b):
    return (a + b - 1) // b


def _round_up(x, m):
    return ((x + m - 1) // m) * m


def _lane_pad(n):
    return _round_up(max(int(n), 1), 128)


def _edge_logit_kernel(src_ref, dst_ref, seg_ref, out_ref):
    # src_ref / dst_ref: (TR, Wp) packed rows (P edges per row, D lanes each)
    # seg_ref: (Wp, P) constant 0/1 segment-sum matrix
    # out_ref: (TR, P) probabilities (P edges per row)
    prod = src_ref[...] * dst_ref[...]                       # VPU, lane-dense
    # Segment-sum over each edge's D lanes via one small MXU matmul per tile.
    logits = jnp.dot(prod, seg_ref[...], preferred_element_type=jnp.float32)
    out_ref[...] = jax.nn.sigmoid(logits).astype(out_ref.dtype)


def pairwise_correlation_decoder_forward(Z, edges, weight, *, tile_edges=32768):
    """
    Z      : (N, K, d) float32
    edges  : (M, 2) int32/int64
    weight : (1, K*K) float32  (torch nn.Linear(K*K, 1, bias=False).weight layout)
    returns: (M, 1) float32 probabilities
    """
    N, K, d = Z.shape
    D = K * d
    M = int(edges.shape[0])

    Zf = Z.astype(jnp.float32)
    w_kk = weight.reshape(K, K).astype(jnp.float32)
    # ZW[n, k, :] = sum_j W[k, j] * Z[n, j, :]   (N*K*K*d FLOPs, negligible)
    ZW = jnp.einsum("kj,njd->nkd", w_kk, Zf)

    # Packing: P edges per 128-lane row when D divides 128, else 1 edge/row.
    if D < 128 and 128 % D == 0:
        P = 128 // D
    else:
        P = 1
    Wp = P * D

    # ---- lane-padding-aware VMEM accounting, per-generation budget ----
    try:
        vmem_cap = int(pltpu.get_tpu_info().vmem_capacity_bytes)
    except Exception:
        vmem_cap = 64 << 20                    # conservative (v7x-sized) default
    vmem_budget = max(8 << 20, vmem_cap // 2)
    # double-buffered src + dst inputs and out, f32, minor dim padded to 128 lanes
    bytes_per_row = 4 * (2 * 2 * _lane_pad(Wp) + 2 * _lane_pad(P))
    max_tile_rows = max(8, (vmem_budget // bytes_per_row) // 8 * 8)

    R = _cdiv(M, P)                                           # packed rows needed
    tile_rows = max(8, min(int(tile_edges) // max(P, 1), max_tile_rows))
    tile_rows = min(tile_rows, _round_up(R, 8))
    # Keep >= 2 grid steps when there is enough work (v7x has 2 TensorCores).
    min_rows_for_split = max(8, 2048 // P)
    if R >= 2 * min_rows_for_split:
        tile_rows = min(tile_rows, _round_up(_cdiv(R, 2), 8))
    tile_rows = _round_up(tile_rows, 8)

    num_tiles = _cdiv(R, tile_rows)
    R_pad = num_tiles * tile_rows
    M_pad = R_pad * P

    # ---- edge gather (XLA glue, see TODO above), then a free packed reshape ----
    src_idx = edges[:, 0].astype(jnp.int32)
    dst_idx = edges[:, 1].astype(jnp.int32)
    if M_pad != M:
        pad = M_pad - M
        src_idx = jnp.pad(src_idx, (0, pad))   # padded edges -> node 0, sliced off
        dst_idx = jnp.pad(dst_idx, (0, pad))
    src_rows = Zf[src_idx].reshape(M_pad, D).reshape(R_pad, Wp)
    dst_rows = ZW[dst_idx].reshape(M_pad, D).reshape(R_pad, Wp)

    # Constant segment-sum matrix: seg[l, e] = 1 iff l // D == e.
    seg = (jnp.arange(Wp, dtype=jnp.int32)[:, None] // D
           == jnp.arange(P, dtype=jnp.int32)[None, :]).astype(jnp.float32)

    vmem_needed = tile_rows * bytes_per_row + (2 << 20)
    vmem_limit = int(min(max(vmem_needed + (8 << 20), 16 << 20),
                         int(vmem_cap * 0.85)))

    out = pl.pallas_call(
        _edge_logit_kernel,
        out_shape=jax.ShapeDtypeStruct((R_pad, P), jnp.float32),
        grid_spec=pltpu.PrefetchScalarGridSpec(
            num_scalar_prefetch=0,
            grid=(num_tiles,),
            in_specs=[
                pl.BlockSpec((tile_rows, Wp), lambda i: (i, 0)),
                pl.BlockSpec((tile_rows, Wp), lambda i: (i, 0)),
                pl.BlockSpec((Wp, P), lambda i: (0, 0)),
            ],
            out_specs=pl.BlockSpec((tile_rows, P), lambda i: (i, 0)),
        ),
        compiler_params=pltpu.CompilerParams(
            dimension_semantics=("parallel",),
            vmem_limit_bytes=vmem_limit,
        ),
    )(src_rows, dst_rows, seg)

    # (R_pad, P) row-major flatten is exactly edge order m = r*P + e.
    return out.reshape(-1)[:M].reshape(M, 1)


def _reference_forward(Z, edges, weight):
    src_emb = Z[edges[:, 0]]                       # (M, K, d)
    dst_emb = jnp.swapaxes(Z[edges[:, 1]], 1, 2)   # (M, d, K)
    H = jnp.einsum("mkd,mdj->mkj", src_emb, dst_emb)
    M = edges.shape[0]
    logits = H.reshape(M, -1) @ weight.T           # (M, 1)
    return jax.nn.sigmoid(logits)


if __name__ == "__main__":
    # Small deterministic setup consistent with the module:
    #   num_factors K = 4, out_dim d_out = 32  ->  d = d_out // K = 8
    #   N = 16 nodes, M = 8 edges
    K = 4
    d_out = 32
    d = d_out // K
    N = 16
    M = 8

    key = jax.random.PRNGKey(0)
    kz, kw, ke, ke2 = jax.random.split(key, 4)

    Z = jax.random.normal(kz, (N, K, d), dtype=jnp.float32)

    # Xavier-uniform init for sign_predictor Linear(K^2, 1, bias=False):
    bound = (6.0 / (K * K + 1)) ** 0.5
    weight = jax.random.uniform(kw, (1, K * K), minval=-bound, maxval=bound,
                                dtype=jnp.float32)

    edges = jax.random.randint(ke, (M, 2), 0, N, dtype=jnp.int32)

    prob = pairwise_correlation_decoder_forward(Z, edges, weight)
    prob = jax.block_until_ready(prob)
    ref = _reference_forward(Z, edges, weight)
    assert prob.shape == (M, 1)
    # MXU f32 matmuls use multi-pass bf16 decomposition -> allow small slack.
    assert jnp.allclose(prob, ref, atol=5e-5, rtol=5e-5)

    # Second check: exercises multiple grid tiles + tail padding.
    M2 = 300
    edges2 = jax.random.randint(ke2, (M2, 2), 0, N, dtype=jnp.int32)
    prob2 = pairwise_correlation_decoder_forward(Z, edges2, weight, tile_edges=128)
    prob2 = jax.block_until_ready(prob2)
    ref2 = _reference_forward(Z, edges2, weight)
    assert prob2.shape == (M2, 1)
    assert jnp.allclose(prob2, ref2, atol=5e-5, rtol=5e-5)

    print("KERNEL_OK")
</pallas_src>

<mosaic_0001>
module attributes {stable_mosaic.version = 11 : i64} {
  func.func @_edge_logit_kernel(%arg0: i32, %arg1: memref<8x128xf32, #tpu.memory_space<vmem>>, %arg2: memref<8x128xf32, #tpu.memory_space<vmem>>, %arg3: memref<128x4xf32, #tpu.memory_space<vmem>>, %arg4: memref<8x4xf32, #tpu.memory_space<vmem>>) attributes {dimension_semantics = [#tpu.dimension_semantics<parallel>], iteration_bounds = array<i64: 1>, scalar_prefetch = 0 : i64, scratch_operands = 0 : i64, tpu.core_type = #tpu.core_type<tc>, window_params = [{transform_indices = @transform_0, window_bounds = array<i64: 8, 128>}, {transform_indices = @transform_1, window_bounds = array<i64: 8, 128>}, {pipeline_mode = #tpu.pipeline_mode<synchronous>, transform_indices = @transform_2, window_bounds = array<i64: 128, 4>}, {transform_indices = @transform_3, window_bounds = array<i64: 8, 4>}]} {
    %c0 = arith.constant 0 : index
    %c0_0 = arith.constant 0 : index
    %0 = vector.load %arg1[%c0, %c0_0] : memref<8x128xf32, #tpu.memory_space<vmem>>, vector<8x128xf32>
    %c0_1 = arith.constant 0 : index
    %c0_2 = arith.constant 0 : index
    %1 = vector.load %arg2[%c0_1, %c0_2] : memref<8x128xf32, #tpu.memory_space<vmem>>, vector<8x128xf32>
    %2 = arith.mulf %0, %1 : vector<8x128xf32>
    %c0_3 = arith.constant 0 : index
    %c0_4 = arith.constant 0 : index
    %3 = vector.load %arg3[%c0_3, %c0_4] : memref<128x4xf32, #tpu.memory_space<vmem>>, vector<128x4xf32>
    %cst = arith.constant dense<0.000000e+00> : vector<8x4xf32>
    %4 = tpu.matmul %2, %3, %cst {dimension_numbers = #tpu.dot_dimension_numbers<[1], [0], [0], [1], [0, 0, 1, 1], [], []>} : vector<8x128xf32>, vector<128x4xf32>, vector<8x4xf32> -> vector<8x4xf32>
    %5 = arith.negf %4 : vector<8x4xf32>
    %6 = math.exp %5 : vector<8x4xf32>
    %cst_5 = arith.constant 1.000000e+00 : f32
    %7 = vector.broadcast %cst_5 : f32 to vector<8x4xf32>
    %8 = arith.addf %7, %6 : vector<8x4xf32>
    %9 = arith.divf %7, %8 : vector<8x4xf32>
    %c0_6 = arith.constant 0 : index
    %c0_7 = arith.constant 0 : index
    %10 = vector.load %arg4[%c0_6, %c0_7] : memref<8x4xf32, #tpu.memory_space<vmem>>, vector<8x4xf32>
    tpu.vector_store %arg4[%c0_6, %c0_7], %9 {strides = array<i32>} : memref<8x4xf32, #tpu.memory_space<vmem>>, vector<8x4xf32>,
    return
  }
  func.func @transform_0(%arg0: i32) -> (i32, i32) {
    %c0_i32 = arith.constant 0 : i32
    %c0_i32_0 = arith.constant 0 : i32
    return %arg0, %c0_i32 : i32, i32
  }
  func.func @transform_1(%arg0: i32) -> (i32, i32) {
    %c0_i32 = arith.constant 0 : i32
    %c0_i32_0 = arith.constant 0 : i32
    return %arg0, %c0_i32 : i32, i32
  }
  func.func @transform_2(%arg0: i32) -> (i32, i32) {
    %c0_i32 = arith.constant 0 : i32
    %c0_i32_0 = arith.constant 0 : i32
    %c0_i32_1 = arith.constant 0 : i32
    return %c0_i32, %c0_i32_0 : i32, i32
  }
  func.func @transform_3(%arg0: i32) -> (i32, i32) {
    %c0_i32 = arith.constant 0 : i32
    %c0_i32_0 = arith.constant 0 : i32
    return %arg0, %c0_i32 : i32, i32
  }
}

</mosaic_0001>

<llo_original>
// kernel: tpu_custom_call.1
$region0: #{tpu_custom_call.1}
  #allocation0 [shape = 'u32[]', space=smem, size = 0x4, offset = 0x4, fixed_abs, tag = 'smem constant byte address 0x4 - core index']
  #allocation1 [shape = 'u32[144,128]{1,0:T(1,128)}', space=vmem, size = 0x12000, scoped, tag = 'internal scratch']
  %s0 = inlined_call_operand.vmem [shape: f32[8,128], index: 0, kind: input, shape index: {}]
  %s1 = inlined_call_operand.vmem [shape: f32[8,128], index: 1, kind: input, shape index: {}]
  %s2 = inlined_call_operand.vmem [shape: f32[128,4], index: 2, kind: input, shape index: {}]
  %s3 = inlined_call_operand.vmem [shape: f32[8,4], index: 3, kind: output, shape index: {}]
  %s4 = sld [smem:[#allocation0]]
  $region22: #{tpu_custom_call.1} parent=0
    _
  %s6 = ssub.s32 1, %s4
  %s7 = scalar_select 0, %s6, %s4
  // Predicated region
  $region2: #{tpu_custom_call.1} parent=0 // pred_check
    _
  $region3: #{tpu_custom_call.1} parent=0 // pred_check_branch
    %9 = sbr.rel (0) target = $region5
  $region4: #{tpu_custom_call.1} parent=0 // pred_region
    _
  $region5: #{tpu_custom_call.1} parent=0 // pred_fallthru
    _
  // Predicated region
  $region6: #{tpu_custom_call.1} parent=0 // pred_check
    _
  $region7: #{tpu_custom_call.1} parent=0 // pred_check_branch
    %11 = sbr.rel (0) target = $region9
  $region8: #{tpu_custom_call.1} parent=0 // pred_region
    _
  $region9: #{tpu_custom_call.1} parent=0 // pred_fallthru
    _
  // Predicated region
  $region10: #{tpu_custom_call.1} parent=0 // pred_check
    _
  $region11: #{tpu_custom_call.1} parent=0 // pred_check_branch
    %13 = sbr.rel (0) target = $region13
  $region12: #{tpu_custom_call.1} parent=0 // pred_region
    _
  $region13: #{tpu_custom_call.1} parent=0 // pred_fallthru
    _
  %v14 = vld [vmem:[%s0] sm:$0xff]
  %v15 = vld [vmem:[%s1] sm:$0xff]
  %v16 = vmul.f32 %v14, %v15
  %v17 = vld [vmem:[%s2] sm:$0xff]
  %v18 = vld [vmem:[%s2 + $0x8] sm:$0xff]
  %v19 = vld [vmem:[%s2 + $0x10] sm:$0xff]
  %v20 = vld [vmem:[%s2 + $0x18] sm:$0xff]
  %v21 = vld [vmem:[%s2 + $0x20] sm:$0xff]
  %v22 = vld [vmem:[%s2 + $0x28] sm:$0xff]
  %v23 = vld [vmem:[%s2 + $0x30] sm:$0xff]
  %v24 = vld [vmem:[%s2 + $0x38] sm:$0xff]
  %v25 = vld [vmem:[%s2 + $0x40] sm:$0xff]
  %v26 = vld [vmem:[%s2 + $0x48] sm:$0xff]
  %v27 = vld [vmem:[%s2 + $0x50] sm:$0xff]
  %v28 = vld [vmem:[%s2 + $0x58] sm:$0xff]
  %v29 = vld [vmem:[%s2 + $0x60] sm:$0xff]
  %v30 = vld [vmem:[%s2 + $0x68] sm:$0xff]
  %v31 = vld [vmem:[%s2 + $0x70] sm:$0xff]
  %v32 = vld [vmem:[%s2 + $0x78] sm:$0xff]
  %33 = vmatprep.subr.mxu0 0.0
  %34 = vmatpush1.msra.mxu0 %v32
  %35 = vmatprep.subr.mxu0 0.0
  %36 = vmatpush1.msra.mxu0 %v31
  %37 = vmatprep.subr.mxu0 0.0
  %38 = vmatpush1.msra.mxu0 %v30
  %39 = vmatprep.subr.mxu0 0.0
  %40 = vmatpush1.msra.mxu0 %v29
  %41 = vmatprep.subr.mxu0 0.0
  %42 = vmatpush1.msra.mxu0 %v28
  %43 = vmatprep.subr.mxu0 0.0
  %44 = vmatpush1.msra.mxu0 %v27
  %45 = vmatprep.subr.mxu0 0.0
  %46 = vmatpush1.msra.mxu0 %v26
  %47 = vmatprep.subr.mxu0 0.0
  %48 = vmatpush1.msra.mxu0 %v25
  %49 = vmatprep.subr.mxu0 0.0
  %50 = vmatpush1.msra.mxu0 %v24
  %51 = vmatprep.subr.mxu0 0.0
  %52 = vmatpush1.msra.mxu0 %v23
  %53 = vmatprep.subr.mxu0 0.0
  %54 = vmatpush1.msra.mxu0 %v22
  %55 = vmatprep.subr.mxu0 0.0
  %56 = vmatpush1.msra.mxu0 %v21
  %57 = vmatprep.subr.mxu0 0.0
  %58 = vmatpush1.msra.mxu0 %v20
  %59 = vmatprep.subr.mxu0 0.0
  %60 = vmatpush1.msra.mxu0 %v19
  %61 = vmatprep.subr.mxu0 0.0
  %62 = vmatpush1.msra.mxu0 %v18
  %63 = vmatprep.subr.mxu0 0.0
  %64 = vmatpush1.msra.mxu0 %v17
  %65 = vmatprep.subr.mxu0 0.0
  %66 = vmatpush2.msra.mxu0 0.0
  %67 = vmatprep.subr.mxu0 0.0
  %68 = vmatpush2.msra.mxu0 0.0
  %69 = vmatprep.subr.mxu0 0.0
  %70 = vmatpush2.msra.mxu0 0.0
  %71 = vmatprep.subr.mxu0 0.0
  %72 = vmatpush2.msra.mxu0 0.0
  %73 = vmatprep.subr.mxu0 0.0
  %74 = vmatpush2.msra.mxu0 0.0
  %75 = vmatprep.subr.mxu0 0.0
  %76 = vmatpush2.msra.mxu0 0.0
  %77 = vmatprep.subr.mxu0 0.0
  %78 = vmatpush2.msra.mxu0 0.0
  %79 = vmatprep.subr.mxu0 0.0
  %80 = vmatpush2.msra.mxu0 0.0
  %81 = vmatprep.subr.mxu0 0.0
  %82 = vmatpush2.msra.mxu0 0.0
  %83 = vmatprep.subr.mxu0 0.0
  %84 = vmatpush2.msra.mxu0 0.0
  %85 = vmatprep.subr.mxu0 0.0
  %86 = vmatpush2.msra.mxu0 0.0
  %87 = vmatprep.subr.mxu0 0.0
  %88 = vmatpush2.msra.mxu0 0.0
  %89 = vmatprep.subr.mxu0 0.0
  %90 = vmatpush2.msra.mxu0 0.0
  %91 = vmatprep.subr.mxu0 0.0
  %92 = vmatpush2.msra.mxu0 0.0
  %93 = vmatprep.subr.mxu0 0.0
  %94 = vmatpush2.msra.mxu0 0.0
  %95 = vmatprep.subr.mxu0 0.0
  %96 = vmatpush2.msra.mxu0 0.0
  %97 = vmatprep.mubr.f32.mxu0 0.0
  %98 = vmatmul.mubr.f32.gmra.mxu0 %v16
  %v99 = vpop.f32.mrf.mxu0
  %v100 = vadd.f32 0.0, %v99
  %v101 = vpop.f32.mrf.mxu0
  %102 = vdwg.mxu0
  %v103 = vxor.u32 %v100, 2147483648
  %v104 = vmul.f32 %v103, 1.442695
  %v105 = vpow.pop %v104
  %v106 = vadd.f32 %v105, 1.0
  %v107 = vrcp.pop %v106
  %v108 = vmul.f32 1.0, %v107
  %vm109 = vcmask 31744
  %110 = vst.msk [vmem:[%s3] sm:$0xff] %vm109, %v108
  // Predicated region
  $region14: #{tpu_custom_call.1} parent=0 // pred_check
    _
  $region15: #{tpu_custom_call.1} parent=0 // pred_check_branch
    %112 = sbr.rel (0) target = $region17
  $region16: #{tpu_custom_call.1} parent=0 // pred_region
    _
  $region17: #{tpu_custom_call.1} parent=0 // pred_fallthru
    _
  // Predicated region
  $region18: #{tpu_custom_call.1} parent=0 // pred_check
    _
  $region19: #{tpu_custom_call.1} parent=0 // pred_check_branch
    %114 = sbr.rel (0) target = $region21
  $region20: #{tpu_custom_call.1} parent=0 // pred_region
    _
  $region21: #{tpu_custom_call.1} parent=0 // pred_fallthru
    _

</llo_original>
